<compile_context>
chip_gen: v7x
topology: tpu7x:2x2x1
jax: 0.10.0
libtpu: 0.0.40
codegen_flags: <defaults>
</compile_context>

<pallas_src>
import functools

import jax
import jax.numpy as jnp
from jax.experimental import pallas as pl
from jax.experimental.pallas import tpu as pltpu

_LANE = 128


def _model_kernel(s_ref, x1_ref, x2_ref, o_ref):
    """relu(linear(0.5*x1) + (0.6*x3) * x2), feature-major / lane-dense.

    s_ref : SMEM (7,) f32  -- [alpha, 0.5*w0, 0.5*w1, 0.5*w2, b0, b1, b2]
    x1_ref: VMEM (1, T) f32 -- batch on the lane axis
    x2_ref: VMEM (3, T) f32
    o_ref : VMEM (3, T) f32
    """
    alpha = s_ref[0]
    x1 = x1_ref[...]                                   # (1, T)
    # Linear(1, 3): in_features == 1, so each output feature is one scalar FMA
    # on the VPU (no MXU).  Static unroll over the 3 output features.
    # TODO(synk): the reference module's second `self.linear(l1)` call is
    # shape-invalid (Linear(1,3) applied to a 3-feature input) and is not
    # reproduced.
    for f in range(3):
        row = x1 * s_ref[1 + f] + s_ref[4 + f] + alpha * x2_ref[pl.ds(f, 1), :]
        o_ref[pl.ds(f, 1), :] = jnp.maximum(row, 0.0)  # relu, lane-dense store


def _round_up(x, m):
    return ((x + m - 1) // m) * m


@functools.partial(jax.jit, static_argnames=("max_tile_b",))
def model_forward_fm(x1_fm, x2_fm, x3, w, b, *, max_tile_b=65536):
    """Feature-major fast path.

    x1_fm: (1, B) f32, x2_fm: (3, B) f32, x3: scalar, w: (3, 1), b: (3,).
    Returns (3, B) f32 = relu(linear(0.5*x1) + (0.6*x3) * x2).
    """
    B = x1_fm.shape[1]

    # Adaptive lane-dense tile: as large as allowed, no larger than needed.
    # Double-buffered VMEM ~= 3 streams * 2 bufs * 8 sublanes * 4 B * tile_b
    # = 192 * tile_b bytes; the 65536 cap is ~12.5 MiB (fits v5e's 16 MiB
    # default scoped VMEM; raise vmem_limit_bytes before going bigger).
    tile_b = _round_up(min(max_tile_b, _round_up(B, _LANE)), _LANE)
    n_tiles = pl.cdiv(B, tile_b)
    # v7x has 2 TensorCores: a single-step grid leaves one idle, so split a
    # lone large tile in two (still lane-dense).  No-op for tiny batches.
    if n_tiles == 1 and tile_b >= 2 * _LANE:
        tile_b = _round_up(tile_b // 2, _LANE)
        n_tiles = pl.cdiv(B, tile_b)
    B_pad = n_tiles * tile_b

    x1_p = x1_fm.astype(jnp.float32)
    x2_p = x2_fm.astype(jnp.float32)
    if B_pad != B:  # pad copies only when the batch is ragged w.r.t. the tile
        x1_p = jnp.pad(x1_p, ((0, 0), (0, B_pad - B)))
        x2_p = jnp.pad(x2_p, ((0, 0), (0, B_pad - B)))

    # Fold the 0.5*x1 scale into W; pack alpha/W/b into one SMEM vector.
    w_scaled = 0.5 * jnp.asarray(w, dtype=jnp.float32).reshape(3)
    b_vec = jnp.asarray(b, dtype=jnp.float32).reshape(3)
    alpha = (0.6 * jnp.asarray(x3, dtype=jnp.float32)).reshape(1)
    scalars = jnp.concatenate([alpha, w_scaled, b_vec])  # (7,) f32

    out_fm = pl.pallas_call(
        _model_kernel,
        out_shape=jax.ShapeDtypeStruct((3, B_pad), jnp.float32),
        grid_spec=pltpu.PrefetchScalarGridSpec(
            num_scalar_prefetch=1,                 # alpha/W/b land in SMEM
            grid=(n_tiles,),
            in_specs=[
                pl.BlockSpec((1, tile_b), lambda i, s: (0, i)),  # x1
                pl.BlockSpec((3, tile_b), lambda i, s: (0, i)),  # x2
            ],
            out_specs=pl.BlockSpec((3, tile_b), lambda i, s: (0, i)),
        ),
        compiler_params=pltpu.CompilerParams(
            dimension_semantics=("parallel",),
        ),
    )(scalars, x1_p, x2_p)

    return out_fm[:, :B] if B_pad != B else out_fm


def model_forward(x1, x2, x3, w, b, *, max_tile_b=65536):
    """PyTorch-layout wrapper: x1 (B,1), x2 (B,3), x3 scalar -> (B,3).

    x1 (B,1)->(1,B) is a free reshape (a size-1 dim); only the x2 and output
    transposes remain at the API boundary -- the kernel stays lane-dense.
    """
    x1_fm = x1.reshape(1, -1)          # (B, 1) -> (1, B), free
    x2_fm = x2.T                       # (B, 3) -> (3, B)
    out_fm = model_forward_fm(x1_fm, x2_fm, x3, w, b, max_tile_b=max_tile_b)
    return out_fm.T                    # (3, B) -> (B, 3)


if __name__ == "__main__":
    key = jax.random.PRNGKey(0)
    k1, k2, kw, kb = jax.random.split(key, 4)

    B = 2
    x1 = jax.random.normal(k1, (B, 1), dtype=jnp.float32)
    x2 = jax.random.normal(k2, (B, 3), dtype=jnp.float32)
    x3 = 1  # scalar, as in the reference script

    # Deterministic nn.Linear(1, 3)-style init: U(-1/sqrt(in), 1/sqrt(in)), in=1.
    w = jax.random.uniform(kw, (3, 1), minval=-1.0, maxval=1.0, dtype=jnp.float32)
    b = jax.random.uniform(kb, (3,), minval=-1.0, maxval=1.0, dtype=jnp.float32)

    out = model_forward(x1, x2, x3, w, b)
    out = jax.block_until_ready(out)

    # Cross-check against a pure-JAX reference of the same (valid) computation.
    l1 = 0.5 * x1 @ w.T + b
    ref = jnp.maximum(l1 + (0.6 * x3) * x2, 0.0)
    assert out.shape == (B, 3), out.shape
    assert jnp.allclose(out, ref, atol=1e-6, rtol=1e-6), (out, ref)

    print("KERNEL_OK")
</pallas_src>

<mosaic_0001>
module attributes {stable_mosaic.version = 11 : i64} {
  func.func @_model_kernel(%arg0: i32, %arg1: memref<7xf32, #tpu.memory_space<smem>>, %arg2: memref<1x128xf32, #tpu.memory_space<vmem>>, %arg3: memref<3x128xf32, #tpu.memory_space<vmem>>, %arg4: memref<3x128xf32, #tpu.memory_space<vmem>>) attributes {dimension_semantics = [#tpu.dimension_semantics<parallel>], iteration_bounds = array<i64: 1>, scalar_prefetch = 1 : i64, scratch_operands = 0 : i64, tpu.core_type = #tpu.core_type<tc>, window_params = [{transform_indices = @transform_0, window_bounds = array<i64: 1, 128>}, {transform_indices = @transform_1, window_bounds = array<i64: 3, 128>}, {transform_indices = @transform_2, window_bounds = array<i64: 3, 128>}]} {
    %c0 = arith.constant 0 : index
    %0 = memref.load %arg1[%c0] : memref<7xf32, #tpu.memory_space<smem>>
    %c0_0 = arith.constant 0 : index
    %c0_1 = arith.constant 0 : index
    %1 = vector.load %arg2[%c0_0, %c0_1] : memref<1x128xf32, #tpu.memory_space<vmem>>, vector<1x128xf32>
    %c1 = arith.constant 1 : index
    %2 = memref.load %arg1[%c1] : memref<7xf32, #tpu.memory_space<smem>>
    %3 = vector.broadcast %2 : f32 to vector<1x128xf32>
    %4 = arith.mulf %1, %3 : vector<1x128xf32>
    %c4 = arith.constant 4 : index
    %5 = memref.load %arg1[%c4] : memref<7xf32, #tpu.memory_space<smem>>
    %6 = vector.broadcast %5 : f32 to vector<1x128xf32>
    %7 = arith.addf %4, %6 : vector<1x128xf32>
    %c0_2 = arith.constant 0 : index
    %c0_3 = arith.constant 0 : index
    %8 = vector.load %arg3[%c0_2, %c0_3] : memref<3x128xf32, #tpu.memory_space<vmem>>, vector<1x128xf32>
    %9 = vector.broadcast %0 : f32 to vector<1x128xf32>
    %10 = arith.mulf %9, %8 : vector<1x128xf32>
    %11 = arith.addf %7, %10 : vector<1x128xf32>
    %cst = arith.constant 0.000000e+00 : f32
    %12 = vector.broadcast %cst : f32 to vector<1x128xf32>
    %13 = arith.maximumf %11, %12 : vector<1x128xf32>
    %c0_4 = arith.constant 0 : index
    %c0_5 = arith.constant 0 : index
    %14 = vector.load %arg4[%c0_4, %c0_5] : memref<3x128xf32, #tpu.memory_space<vmem>>, vector<1x128xf32>
    tpu.vector_store %arg4[%c0_4, %c0_5], %13 {strides = array<i32>} : memref<3x128xf32, #tpu.memory_space<vmem>>, vector<1x128xf32>,
    %c2 = arith.constant 2 : index
    %15 = memref.load %arg1[%c2] : memref<7xf32, #tpu.memory_space<smem>>
    %16 = vector.broadcast %15 : f32 to vector<1x128xf32>
    %17 = arith.mulf %1, %16 : vector<1x128xf32>
    %c5 = arith.constant 5 : index
    %18 = memref.load %arg1[%c5] : memref<7xf32, #tpu.memory_space<smem>>
    %19 = vector.broadcast %18 : f32 to vector<1x128xf32>
    %20 = arith.addf %17, %19 : vector<1x128xf32>
    %c1_6 = arith.constant 1 : index
    %c0_7 = arith.constant 0 : index
    %21 = vector.load %arg3[%c1_6, %c0_7] : memref<3x128xf32, #tpu.memory_space<vmem>>, vector<1x128xf32>
    %22 = vector.broadcast %0 : f32 to vector<1x128xf32>
    %23 = arith.mulf %22, %21 : vector<1x128xf32>
    %24 = arith.addf %20, %23 : vector<1x128xf32>
    %cst_8 = arith.constant 0.000000e+00 : f32
    %25 = vector.broadcast %cst_8 : f32 to vector<1x128xf32>
    %26 = arith.maximumf %24, %25 : vector<1x128xf32>
    %c1_9 = arith.constant 1 : index
    %c0_10 = arith.constant 0 : index
    %27 = vector.load %arg4[%c1_9, %c0_10] : memref<3x128xf32, #tpu.memory_space<vmem>>, vector<1x128xf32>
    tpu.vector_store %arg4[%c1_9, %c0_10], %26 {strides = array<i32>} : memref<3x128xf32, #tpu.memory_space<vmem>>, vector<1x128xf32>,
    %c3 = arith.constant 3 : index
    %28 = memref.load %arg1[%c3] : memref<7xf32, #tpu.memory_space<smem>>
    %29 = vector.broadcast %28 : f32 to vector<1x128xf32>
    %30 = arith.mulf %1, %29 : vector<1x128xf32>
    %c6 = arith.constant 6 : index
    %31 = memref.load %arg1[%c6] : memref<7xf32, #tpu.memory_space<smem>>
    %32 = vector.broadcast %31 : f32 to vector<1x128xf32>
    %33 = arith.addf %30, %32 : vector<1x128xf32>
    %c2_11 = arith.constant 2 : index
    %c0_12 = arith.constant 0 : index
    %34 = vector.load %arg3[%c2_11, %c0_12] : memref<3x128xf32, #tpu.memory_space<vmem>>, vector<1x128xf32>
    %35 = vector.broadcast %0 : f32 to vector<1x128xf32>
    %36 = arith.mulf %35, %34 : vector<1x128xf32>
    %37 = arith.addf %33, %36 : vector<1x128xf32>
    %cst_13 = arith.constant 0.000000e+00 : f32
    %38 = vector.broadcast %cst_13 : f32 to vector<1x128xf32>
    %39 = arith.maximumf %37, %38 : vector<1x128xf32>
    %c2_14 = arith.constant 2 : index
    %c0_15 = arith.constant 0 : index
    %40 = vector.load %arg4[%c2_14, %c0_15] : memref<3x128xf32, #tpu.memory_space<vmem>>, vector<1x128xf32>
    tpu.vector_store %arg4[%c2_14, %c0_15], %39 {strides = array<i32>} : memref<3x128xf32, #tpu.memory_space<vmem>>, vector<1x128xf32>,
    return
  }
  func.func @transform_0(%arg0: i32, %arg1: memref<7xf32, #tpu.memory_space<smem>>) -> (i32, i32) {
    %c0_i32 = arith.constant 0 : i32
    %c0_i32_0 = arith.constant 0 : i32
    return %c0_i32, %arg0 : i32, i32
  }
  func.func @transform_1(%arg0: i32, %arg1: memref<7xf32, #tpu.memory_space<smem>>) -> (i32, i32) {
    %c0_i32 = arith.constant 0 : i32
    %c0_i32_0 = arith.constant 0 : i32
    return %c0_i32, %arg0 : i32, i32
  }
  func.func @transform_2(%arg0: i32, %arg1: memref<7xf32, #tpu.memory_space<smem>>) -> (i32, i32) {
    %c0_i32 = arith.constant 0 : i32
    %c0_i32_0 = arith.constant 0 : i32
    return %c0_i32, %arg0 : i32, i32
  }
}

</mosaic_0001>

<llo_original>
// kernel: model_forward_fm.1
$region0: #{model_forward_fm.1}
  #allocation0 [shape = 'u32[]', space=smem, size = 0x4, offset = 0x4, fixed_abs, tag = 'smem constant byte address 0x4 - core index']
  #allocation1 [shape = 'u32[144,128]{1,0:T(1,128)}', space=vmem, size = 0x12000, scoped, tag = 'internal scratch']
  #allocation2 [shape = 's32[1]{0}', space=sflag, size = 0x4, scoped, tag = 'scoped memory for model_forward_fm.1']
  #allocation3 [shape = 'u8[512]{0}', space=smem, size = 0x200, scoped, tag = 'prefetched SMEM operand 0']
  %s0 = inlined_call_operand.vmem [shape: f32[7], index: 0, kind: input, shape index: {}]
  %s1 = inlined_call_operand.vmem [shape: f32[1,128], index: 1, kind: input, shape index: {}]
  %s2 = inlined_call_operand.vmem [shape: f32[3,128], index: 2, kind: input, shape index: {}]
  %s3 = inlined_call_operand.vmem [shape: f32[3,128], index: 3, kind: output, shape index: {}]
  %s4 = sld [smem:[#allocation0]]
  $region18: #{model_forward_fm.1} parent=0
    _
  %s6 = ssub.s32 1, %s4
  %s7 = scalar_select 0, %s6, %s4
  %s8 = sshll.u32 %s0, 4
  %s9 = int_to_ptr.vmem [resolvable:$true] %s8
  %11 = dma.vmem_to_smem %s9, 16, [#allocation3], [#allocation2]
  %12 = dma.done [#allocation2], 16
  %13 = sfence
  // Predicated region
  $region2: #{model_forward_fm.1} parent=0 // pred_check
    _
  $region3: #{model_forward_fm.1} parent=0 // pred_check_branch
    %15 = sbr.rel (0) target = $region5
  $region4: #{model_forward_fm.1} parent=0 // pred_region
    _
  $region5: #{model_forward_fm.1} parent=0 // pred_fallthru
    _
  // Predicated region
  $region6: #{model_forward_fm.1} parent=0 // pred_check
    _
  $region7: #{model_forward_fm.1} parent=0 // pred_check_branch
    %17 = sbr.rel (0) target = $region9
  $region8: #{model_forward_fm.1} parent=0 // pred_region
    _
  $region9: #{model_forward_fm.1} parent=0 // pred_fallthru
    _
  %s18 = sld [smem:[#allocation3]]
  %v19 = vld [vmem:[%s1] sm:$0x1]
  %s20 = sld [smem:[#allocation3 + $0x1]]
  %v21 = vstv %s20
  %v22 = vmul.f32 %v19, %v21
  %s23 = sld [smem:[#allocation3 + $0x4]]
  %v24 = vstv %s23
  %v25 = vadd.f32 %v22, %v24
  %v26 = vld [vmem:[%s2] sm:$0x1]
  %v27 = vstv %s18
  %v28 = vmul.f32 %v27, %v26
  %v29 = vadd.f32 %v25, %v28
  %v30 = vmax.f32 %v29, 0.0
  %31 = vst [vmem:[%s3] sm:$0x1] %v30
  %s32 = sld [smem:[#allocation3 + $0x2]]
  %v33 = vstv %s32
  %v34 = vmul.f32 %v19, %v33
  %s35 = sld [smem:[#allocation3 + $0x5]]
  %v36 = vstv %s35
  %v37 = vadd.f32 %v34, %v36
  %v38 = vld [vmem:[%s2 + $0x1] sm:$0x1]
  %v39 = vmul.f32 %v27, %v38
  %v40 = vadd.f32 %v37, %v39
  %v41 = vmax.f32 %v40, 0.0
  %42 = vst [vmem:[%s3 + $0x1] sm:$0x1] %v41
  %s43 = sld [smem:[#allocation3 + $0x3]]
  %v44 = vstv %s43
  %v45 = vmul.f32 %v19, %v44
  %s46 = sld [smem:[#allocation3 + $0x6]]
  %v47 = vstv %s46
  %v48 = vadd.f32 %v45, %v47
  %v49 = vld [vmem:[%s2 + $0x2] sm:$0x1]
  %v50 = vmul.f32 %v27, %v49
  %v51 = vadd.f32 %v48, %v50
  %v52 = vmax.f32 %v51, 0.0
  %53 = vst [vmem:[%s3 + $0x2] sm:$0x1] %v52
  // Predicated region
  $region10: #{model_forward_fm.1} parent=0 // pred_check
    _
  $region11: #{model_forward_fm.1} parent=0 // pred_check_branch
    %55 = sbr.rel (0) target = $region13
  $region12: #{model_forward_fm.1} parent=0 // pred_region
    _
  $region13: #{model_forward_fm.1} parent=0 // pred_fallthru
    _
  // Predicated region
  $region14: #{model_forward_fm.1} parent=0 // pred_check
    _
  $region15: #{model_forward_fm.1} parent=0 // pred_check_branch
    %57 = sbr.rel (0) target = $region17
  $region16: #{model_forward_fm.1} parent=0 // pred_region
    _
  $region17: #{model_forward_fm.1} parent=0 // pred_fallthru
    _

</llo_original>
